<compile_context>
chip_gen: v7x
topology: tpu7x:2x2x1
jax: 0.10.0
libtpu: 0.0.40
codegen_flags: <defaults>
</compile_context>

<pallas_src>
import functools

import jax
import jax.numpy as jnp
from jax import lax
from jax.experimental import pallas as pl
from jax.experimental.pallas import tpu as pltpu

LANES = 128        # lane-dense width
NEG = -1e30        # mask value for padded logit lanes


def siamese_kernel(x_ref, w1_ref, wslab_ref, bslab_ref, out_ref, *, emb, n_cls):
    """One grid step over TILE_B batch rows, both branches stacked on sublanes.

    x_ref    : [2*TILE_B, Kp]  rows [0,TILE_B) = branch 1, [TILE_B,2*TILE_B) = branch 2
    w1_ref   : [Kp, 128]       child F1 weight (hidden zero-padded to 128 lanes)
    wslab_ref: [4, 128, 128]   [child F2, head F1 (o1 half), head F1 (o2 half), head F2]
    bslab_ref: [4, 128]        matching biases; head-F2 pad lanes hold -1e30
    out_ref  : [TILE_B, 128]   packed: out1 lanes [0,emb), out2 [emb,2emb), res [2emb,2emb+n_cls)
    """
    tb = out_ref.shape[0]

    # Weight-shared child model, run ONCE on both branches (rows pre-stacked
    # by the wrapper, so no in-kernel concatenate / VMEM copy).
    h = jnp.dot(x_ref[...], w1_ref[...], preferred_element_type=jnp.float32)
    h = jnp.maximum(h + bslab_ref[0:1, :], 0.0)                                # [2tb, 128]
    o = jnp.dot(h, wslab_ref[0], preferred_element_type=jnp.float32) + bslab_ref[1:2, :]

    o1 = o[:tb]          # branch-1 embeddings; lanes >= emb are exactly zero
    o2 = o[tb:]          # branch-2 embeddings

    # Head F1: Linear(20,100) on concat(o1,o2) == o1 @ Wf1[:emb] + o2 @ Wf1[emb:]
    # (zero-padded weights, padded lanes contribute nothing).
    z = (jnp.dot(o1, wslab_ref[1], preferred_element_type=jnp.float32)
         + jnp.dot(o2, wslab_ref[2], preferred_element_type=jnp.float32)
         + bslab_ref[2:3, :])
    z = jnp.maximum(z, 0.0)

    # Head F2: Linear(100,2); bias pad lanes are -1e30 so padded logits vanish
    # from the softmax (f32: exp(-1e30 - m) underflows to exactly 0).
    logits = jnp.dot(z, wslab_ref[3], preferred_element_type=jnp.float32) + bslab_ref[3:4, :]

    m = jnp.max(logits, axis=-1, keepdims=True)
    lse = m + jnp.log(jnp.sum(jnp.exp(logits - m), axis=-1, keepdims=True))
    res = logits - lse                                                         # [tb, 128]

    # Zero the (~-1e30) pad lanes of res, then pack everything into one
    # lane-dense 128-lane slab.  The rolls go to the XLU slot (≈ free).
    lane = lax.broadcasted_iota(jnp.int32, res.shape, 1)
    res = jnp.where(lane < n_cls, res, 0.0)
    out_ref[...] = (o1
                    + pltpu.roll(o2, emb, axis=1)
                    + pltpu.roll(res, 2 * emb, axis=1))


def siamese_forward(x, params):
    """x: [B, 2, H, W] float32. Returns (res [B,2], out1 [B,10], out2 [B,10])."""
    B, two, H, W = x.shape
    assert two == 2
    HW = H * W
    (w1, b1, w2, b2, wf1, bf1, wf2, bf2) = params
    HID = w1.shape[1]
    OUT = w2.shape[1]          # 10
    NHEAD = wf1.shape[1]       # 100
    NCLS = wf2.shape[1]        # 2
    assert HID <= LANES and OUT <= LANES and NHEAD <= LANES
    assert 2 * OUT + NCLS <= LANES          # packed output fits one 128-lane slab

    Kp = pl.cdiv(HW, 256) * 256             # contraction dim 196 -> 256 (zero pad)

    # --- tile selection: pick TILE_B first, then pad B up to it -------------
    TILE_B = 1024 if B >= 8192 else 512     # VMEM-safe on v5e/v6e/v7x (see vmem_limit)
    if B >= 32:
        # Keep >= 2 grid steps so the "parallel" batch axis shards across
        # v7x's two TensorCores; tile stays a multiple of 8 sublanes.
        TILE_B = min(TILE_B, pl.cdiv(pl.cdiv(B, 2), 8) * 8)
    else:
        TILE_B = min(TILE_B, max(8, pl.cdiv(B, 8) * 8))
    Bp = pl.cdiv(B, TILE_B) * TILE_B
    nT = Bp // TILE_B

    # --- input relayout: tile-major, branch-stacked (ONE wrapper copy) ------
    # Rows of tile i = [branch-1 rows of tile i ; branch-2 rows of tile i].
    # TODO(synk): if the producer can emit this layout directly, drop this
    # relayout copy (at large B it is roughly half the end-to-end HBM traffic).
    xp = jnp.pad(x.reshape(B, 2, HW), ((0, Bp - B), (0, 0), (0, Kp - HW)))
    xs = (xp.reshape(nT, TILE_B, 2, Kp)
            .transpose(0, 2, 1, 3)
            .reshape(nT * 2 * TILE_B, Kp))                                   # [nT*2*TILE_B, Kp]

    # --- weights: zero-padded, lane-dense, packed into 3 arrays -------------
    w1p = jnp.pad(w1, ((0, Kp - HW), (0, LANES - HID)))                      # [Kp, 128]
    w2p = jnp.pad(w2, ((0, LANES - HID), (0, LANES - OUT)))                  # [128, 128]
    wf1a = jnp.pad(wf1[:OUT], ((0, LANES - OUT), (0, LANES - NHEAD)))        # [128, 128]
    wf1b = jnp.pad(wf1[OUT:], ((0, LANES - OUT), (0, LANES - NHEAD)))        # [128, 128]
    wf2p = jnp.pad(wf2, ((0, LANES - NHEAD), (0, LANES - NCLS)))             # [128, 128]
    wslab = jnp.stack([w2p, wf1a, wf1b, wf2p], axis=0)                       # [4, 128, 128]

    bslab = jnp.concatenate([
        jnp.pad(b1, ((0, 0), (0, LANES - HID))),
        jnp.pad(b2, ((0, 0), (0, LANES - OUT))),
        jnp.pad(bf1, ((0, 0), (0, LANES - NHEAD))),
        jnp.pad(bf2, ((0, 0), (0, LANES - NCLS)), constant_values=NEG),
    ], axis=0)                                                               # [4, 128]

    grid = (nT,)
    in_specs = [
        pl.BlockSpec((2 * TILE_B, Kp), lambda i: (i, 0)),
        pl.BlockSpec(w1p.shape, lambda i: (0, 0)),
        pl.BlockSpec(wslab.shape, lambda i: (0, 0, 0)),
        pl.BlockSpec(bslab.shape, lambda i: (0, 0)),
    ]
    out_specs = pl.BlockSpec((TILE_B, LANES), lambda i: (i, 0))
    out_shape = jax.ShapeDtypeStruct((Bp, LANES), jnp.float32)

    flops = (2 * (2 * Bp) * Kp * LANES            # child F1 (both branches stacked)
             + 2 * (2 * Bp) * LANES * LANES       # child F2
             + 2 * 2 * Bp * LANES * LANES         # head F1 (two split dots)
             + 2 * Bp * LANES * LANES)            # head F2
    bytes_accessed = 4 * (xs.size + w1p.size + wslab.size + bslab.size + Bp * LANES)

    packed = pl.pallas_call(
        functools.partial(siamese_kernel, emb=OUT, n_cls=NCLS),
        out_shape=out_shape,
        grid_spec=pltpu.PrefetchScalarGridSpec(
            num_scalar_prefetch=0,
            grid=grid,
            in_specs=in_specs,
            out_specs=out_specs,
        ),
        compiler_params=pltpu.CompilerParams(
            dimension_semantics=("parallel",),
            vmem_limit_bytes=32 * 1024 * 1024),
        cost_estimate=pl.CostEstimate(
            flops=flops,
            transcendentals=Bp * LANES + Bp,
            bytes_accessed=bytes_accessed),
    )(xs, w1p, wslab, bslab)

    out1 = packed[:B, :OUT]
    out2 = packed[:B, OUT:2 * OUT]
    res = packed[:B, 2 * OUT:2 * OUT + NCLS]
    return res, out1, out2


def init_params(key, in_features, hidden):
    """Deterministic parameter init. Weights stored as [in, out]."""
    ks = jax.random.split(key, 8)

    def lin(kw, kb, fan_in, fan_out):
        scale = 1.0 / jnp.sqrt(fan_in)
        w = jax.random.uniform(kw, (fan_in, fan_out), jnp.float32, -scale, scale)
        b = jax.random.uniform(kb, (1, fan_out), jnp.float32, -scale, scale)
        return w, b

    w1, b1 = lin(ks[0], ks[1], in_features, hidden)   # child Linear(HW, hidden)
    w2, b2 = lin(ks[2], ks[3], hidden, 10)            # child Linear(hidden, 10)
    wf1, bf1 = lin(ks[4], ks[5], 20, 100)             # head F1: Linear(20, 100)
    wf2, bf2 = lin(ks[6], ks[7], 100, 2)              # head F2: Linear(100, 2)
    return (w1, b1, w2, b2, wf1, bf1, wf2, bf2)


def siamese_reference(x, params):
    """Pure-JAX reference mirroring the PyTorch forward exactly."""
    B, _, H, W = x.shape
    (w1, b1, w2, b2, wf1, bf1, wf2, bf2) = params
    x1 = x[:, 0, :, :].reshape(B, H * W)
    x2 = x[:, 1, :, :].reshape(B, H * W)

    def child(z):
        h = jnp.maximum(z @ w1 + b1, 0.0)
        return h @ w2 + b2

    out1 = child(x1)
    out2 = child(x2)
    tot = jnp.concatenate([out1, out2], axis=1)
    z = jnp.maximum(tot @ wf1 + bf1, 0.0)
    logits = z @ wf2 + bf2
    res = jax.nn.log_softmax(logits, axis=-1)
    return res, out1, out2


if __name__ == "__main__":
    key = jax.random.PRNGKey(0)
    kx, kp = jax.random.split(key)

    B, H, W, HID = 8, 14, 14, 32
    x = jax.random.normal(kx, (B, 2, H, W), jnp.float32)
    params = init_params(kp, H * W, HID)

    res, out1, out2 = siamese_forward(x, params)
    jax.block_until_ready((res, out1, out2))

    # sanity check against pure-JAX reference
    r_res, r_out1, r_out2 = siamese_reference(x, params)
    assert jnp.allclose(res, r_res, atol=1e-5, rtol=1e-5)
    assert jnp.allclose(out1, r_out1, atol=1e-5, rtol=1e-5)
    assert jnp.allclose(out2, r_out2, atol=1e-5, rtol=1e-5)

    print("KERNEL_OK")
</pallas_src>

<mosaic_0001>
module attributes {stable_mosaic.version = 11 : i64} {
  func.func @siamese_kernel(%arg0: i32, %arg1: memref<16x256xf32, #tpu.memory_space<vmem>>, %arg2: memref<256x128xf32, #tpu.memory_space<vmem>>, %arg3: memref<4x128x128xf32, #tpu.memory_space<vmem>>, %arg4: memref<4x128xf32, #tpu.memory_space<vmem>>, %arg5: memref<8x128xf32, #tpu.memory_space<vmem>>) attributes {dimension_semantics = [#tpu.dimension_semantics<parallel>], iteration_bounds = array<i64: 1>, scalar_prefetch = 0 : i64, scratch_operands = 0 : i64, tpu.core_type = #tpu.core_type<tc>, window_params = [{transform_indices = @transform_0, window_bounds = array<i64: 16, 256>}, {pipeline_mode = #tpu.pipeline_mode<synchronous>, transform_indices = @transform_1, window_bounds = array<i64: 256, 128>}, {pipeline_mode = #tpu.pipeline_mode<synchronous>, transform_indices = @transform_2, window_bounds = array<i64: 4, 128, 128>}, {pipeline_mode = #tpu.pipeline_mode<synchronous>, transform_indices = @transform_3, window_bounds = array<i64: 4, 128>}, {transform_indices = @transform_4, window_bounds = array<i64: 8, 128>}]} {
    %c0 = arith.constant 0 : index
    %c0_0 = arith.constant 0 : index
    %0 = vector.load %arg1[%c0, %c0_0] : memref<16x256xf32, #tpu.memory_space<vmem>>, vector<16x256xf32>
    %c0_1 = arith.constant 0 : index
    %c0_2 = arith.constant 0 : index
    %1 = vector.load %arg2[%c0_1, %c0_2] : memref<256x128xf32, #tpu.memory_space<vmem>>, vector<256x128xf32>
    %cst = arith.constant dense<0.000000e+00> : vector<16x128xf32>
    %2 = tpu.matmul %0, %1, %cst {dimension_numbers = #tpu.dot_dimension_numbers<[1], [0], [0], [1], [0, 0, 1, 1], [], []>} : vector<16x256xf32>, vector<256x128xf32>, vector<16x128xf32> -> vector<16x128xf32>
    %c0_3 = arith.constant 0 : index
    %c0_4 = arith.constant 0 : index
    %3 = vector.load %arg4[%c0_3, %c0_4] : memref<4x128xf32, #tpu.memory_space<vmem>>, vector<1x128xf32>
    %4 = vector.broadcast %3 : vector<1x128xf32> to vector<16x128xf32>
    %5 = arith.addf %2, %4 : vector<16x128xf32>
    %cst_5 = arith.constant 0.000000e+00 : f32
    %6 = vector.broadcast %cst_5 : f32 to vector<16x128xf32>
    %7 = arith.maximumf %5, %6 : vector<16x128xf32>
    %c0_6 = arith.constant 0 : index
    %c0_7 = arith.constant 0 : index
    %c0_8 = arith.constant 0 : index
    %8 = vector.load %arg3[%c0_6, %c0_7, %c0_8] : memref<4x128x128xf32, #tpu.memory_space<vmem>>, vector<1x128x128xf32>
    %9 = vector.shape_cast %8 : vector<1x128x128xf32> to vector<128x128xf32>
    %cst_9 = arith.constant dense<0.000000e+00> : vector<16x128xf32>
    %10 = tpu.matmul %7, %9, %cst_9 {dimension_numbers = #tpu.dot_dimension_numbers<[1], [0], [0], [1], [0, 0, 1, 1], [], []>} : vector<16x128xf32>, vector<128x128xf32>, vector<16x128xf32> -> vector<16x128xf32>
    %c1 = arith.constant 1 : index
    %c0_10 = arith.constant 0 : index
    %11 = vector.load %arg4[%c1, %c0_10] : memref<4x128xf32, #tpu.memory_space<vmem>>, vector<1x128xf32>
    %12 = vector.broadcast %11 : vector<1x128xf32> to vector<16x128xf32>
    %13 = arith.addf %10, %12 : vector<16x128xf32>
    %14 = vector.extract_strided_slice %13 {offsets = [0, 0], sizes = [8, 128], strides = [1, 1]} : vector<16x128xf32> to vector<8x128xf32>
    %15 = vector.extract_strided_slice %13 {offsets = [8, 0], sizes = [8, 128], strides = [1, 1]} : vector<16x128xf32> to vector<8x128xf32>
    %c1_11 = arith.constant 1 : index
    %c0_12 = arith.constant 0 : index
    %c0_13 = arith.constant 0 : index
    %16 = vector.load %arg3[%c1_11, %c0_12, %c0_13] : memref<4x128x128xf32, #tpu.memory_space<vmem>>, vector<1x128x128xf32>
    %17 = vector.shape_cast %16 : vector<1x128x128xf32> to vector<128x128xf32>
    %cst_14 = arith.constant dense<0.000000e+00> : vector<8x128xf32>
    %18 = tpu.matmul %14, %17, %cst_14 {dimension_numbers = #tpu.dot_dimension_numbers<[1], [0], [0], [1], [0, 0, 1, 1], [], []>} : vector<8x128xf32>, vector<128x128xf32>, vector<8x128xf32> -> vector<8x128xf32>
    %c2 = arith.constant 2 : index
    %c0_15 = arith.constant 0 : index
    %c0_16 = arith.constant 0 : index
    %19 = vector.load %arg3[%c2, %c0_15, %c0_16] : memref<4x128x128xf32, #tpu.memory_space<vmem>>, vector<1x128x128xf32>
    %20 = vector.shape_cast %19 : vector<1x128x128xf32> to vector<128x128xf32>
    %cst_17 = arith.constant dense<0.000000e+00> : vector<8x128xf32>
    %21 = tpu.matmul %15, %20, %cst_17 {dimension_numbers = #tpu.dot_dimension_numbers<[1], [0], [0], [1], [0, 0, 1, 1], [], []>} : vector<8x128xf32>, vector<128x128xf32>, vector<8x128xf32> -> vector<8x128xf32>
    %22 = arith.addf %18, %21 : vector<8x128xf32>
    %c2_18 = arith.constant 2 : index
    %c0_19 = arith.constant 0 : index
    %23 = vector.load %arg4[%c2_18, %c0_19] : memref<4x128xf32, #tpu.memory_space<vmem>>, vector<1x128xf32>
    %24 = vector.broadcast %23 : vector<1x128xf32> to vector<8x128xf32>
    %25 = arith.addf %22, %24 : vector<8x128xf32>
    %cst_20 = arith.constant 0.000000e+00 : f32
    %26 = vector.broadcast %cst_20 : f32 to vector<8x128xf32>
    %27 = arith.maximumf %25, %26 : vector<8x128xf32>
    %c3 = arith.constant 3 : index
    %c0_21 = arith.constant 0 : index
    %c0_22 = arith.constant 0 : index
    %28 = vector.load %arg3[%c3, %c0_21, %c0_22] : memref<4x128x128xf32, #tpu.memory_space<vmem>>, vector<1x128x128xf32>
    %29 = vector.shape_cast %28 : vector<1x128x128xf32> to vector<128x128xf32>
    %cst_23 = arith.constant dense<0.000000e+00> : vector<8x128xf32>
    %30 = tpu.matmul %27, %29, %cst_23 {dimension_numbers = #tpu.dot_dimension_numbers<[1], [0], [0], [1], [0, 0, 1, 1], [], []>} : vector<8x128xf32>, vector<128x128xf32>, vector<8x128xf32> -> vector<8x128xf32>
    %c3_24 = arith.constant 3 : index
    %c0_25 = arith.constant 0 : index
    %31 = vector.load %arg4[%c3_24, %c0_25] : memref<4x128xf32, #tpu.memory_space<vmem>>, vector<1x128xf32>
    %32 = vector.broadcast %31 : vector<1x128xf32> to vector<8x128xf32>
    %33 = arith.addf %30, %32 : vector<8x128xf32>
    %cst_26 = arith.constant dense<0xFF800000> : vector<8xf32>
    %34 = vector.multi_reduction <maximumf>, %33, %cst_26 [1] : vector<8x128xf32> to vector<8xf32>
    %35 = vector.shape_cast %34 : vector<8xf32> to vector<8x1xf32>
    %36 = vector.broadcast %35 : vector<8x1xf32> to vector<8x128xf32>
    %37 = arith.subf %33, %36 : vector<8x128xf32>
    %38 = math.exp %37 : vector<8x128xf32>
    %cst_27 = arith.constant dense<0.000000e+00> : vector<8xf32>
    %39 = vector.multi_reduction <add>, %38, %cst_27 [1] : vector<8x128xf32> to vector<8xf32>
    %40 = vector.shape_cast %39 : vector<8xf32> to vector<8x1xf32>
    %41 = math.log %40 : vector<8x1xf32>
    %42 = arith.addf %35, %41 : vector<8x1xf32>
    %43 = vector.broadcast %42 : vector<8x1xf32> to vector<8x128xf32>
    %44 = arith.subf %33, %43 : vector<8x128xf32>
    %45 = tpu.iota {dimensions = array<i32: 1>} : vector<8x128xi32>
    %c2_i32 = arith.constant 2 : i32
    %46 = vector.broadcast %c2_i32 : i32 to vector<8x128xi32>
    %47 = arith.cmpi slt, %45, %46 : vector<8x128xi32>
    %cst_28 = arith.constant 0.000000e+00 : f32
    %48 = vector.broadcast %cst_28 : f32 to vector<8x128xf32>
    %49 = arith.select %47, %44, %48 : vector<8x128xi1>, vector<8x128xf32>
    %c10_i32 = arith.constant 10 : i32
    %50 = tpu.dynamic_rotate %15 by %c10_i32 dim 1 : vector<8x128xf32>, i32 -> vector<8x128xf32>
    %51 = arith.addf %14, %50 : vector<8x128xf32>
    %c20_i32 = arith.constant 20 : i32
    %52 = tpu.dynamic_rotate %49 by %c20_i32 dim 1 : vector<8x128xf32>, i32 -> vector<8x128xf32>
    %53 = arith.addf %51, %52 : vector<8x128xf32>
    %c0_29 = arith.constant 0 : index
    %c0_30 = arith.constant 0 : index
    %54 = vector.load %arg5[%c0_29, %c0_30] : memref<8x128xf32, #tpu.memory_space<vmem>>, vector<8x128xf32>
    tpu.vector_store %arg5[%c0_29, %c0_30], %53 {strides = array<i32>} : memref<8x128xf32, #tpu.memory_space<vmem>>, vector<8x128xf32>,
    return
  }
  func.func @transform_0(%arg0: i32) -> (i32, i32) {
    %c0_i32 = arith.constant 0 : i32
    %c0_i32_0 = arith.constant 0 : i32
    return %arg0, %c0_i32 : i32, i32
  }
  func.func @transform_1(%arg0: i32) -> (i32, i32) {
    %c0_i32 = arith.constant 0 : i32
    %c0_i32_0 = arith.constant 0 : i32
    %c0_i32_1 = arith.constant 0 : i32
    return %c0_i32, %c0_i32_0 : i32, i32
  }
  func.func @transform_2(%arg0: i32) -> (i32, i32, i32) {
    %c0_i32 = arith.constant 0 : i32
    %c0_i32_0 = arith.constant 0 : i32
    %c0_i32_1 = arith.constant 0 : i32
    %c0_i32_2 = arith.constant 0 : i32
    return %c0_i32, %c0_i32_0, %c0_i32_1 : i32, i32, i32
  }
  func.func @transform_3(%arg0: i32) -> (i32, i32) {
    %c0_i32 = arith.constant 0 : i32
    %c0_i32_0 = arith.constant 0 : i32
    %c0_i32_1 = arith.constant 0 : i32
    return %c0_i32, %c0_i32_0 : i32, i32
  }
  func.func @transform_4(%arg0: i32) -> (i32, i32) {
    %c0_i32 = arith.constant 0 : i32
    %c0_i32_0 = arith.constant 0 : i32
    return %arg0, %c0_i32 : i32, i32
  }
}

</mosaic_0001>

<llo_original>
// kernel: tpu_custom_call.1
$region0: #{tpu_custom_call.1}
  #allocation0 [shape = 'u32[]', space=smem, size = 0x4, offset = 0x4, fixed_abs, tag = 'smem constant byte address 0x4 - core index']
  #allocation1 [shape = 'u32[144,128]{1,0:T(1,128)}', space=vmem, size = 0x12000, scoped, tag = 'internal scratch']
  %s0 = inlined_call_operand.hbm [shape: f32[16,256], index: 0, kind: input, shape index: {}]
  %s1 = inlined_call_operand.hbm [shape: f32[256,128], index: 1, kind: input, shape index: {}]
  %s2 = inlined_call_operand.hbm [shape: f32[4,128,128], index: 2, kind: input, shape index: {}]
  %s3 = inlined_call_operand.vmem [shape: f32[4,128], index: 3, kind: input, shape index: {}]
  %s4 = inlined_call_operand.hbm [shape: f32[8,128], index: 4, kind: output, shape index: {}]
  %s5 = sld [smem:[#allocation0]]
  $region38: #{tpu_custom_call.1} parent=0
    _
  %s7 = ssub.s32 1, %s5
  %s8 = scalar_select 0, %s7, %s5
  $region1: #{tpu_custom_call.1} parent=0
    #allocation2 [shape = 'u8[16384]{0}', space=vmem, size = 0x4000, scoped, tag = 'input window, operand 0, single buffered']
    #allocation3 [shape = 's32[1]{0}', space=sflag, size = 0x4, scoped, tag = 'scoped memory for tpu_custom_call.1']
    #allocation4 [shape = 's32[1]{0}', space=sflag, size = 0x4, scoped, tag = 'scoped memory for tpu_custom_call.1']
    #allocation5 [shape = 'u8[131072]{0}', space=vmem, size = 0x20000, scoped, tag = 'input window, operand 1, single buffered']
    #allocation6 [shape = 's32[1]{0}', space=sflag, size = 0x4, scoped, tag = 'scoped memory for tpu_custom_call.1']
    #allocation7 [shape = 'u8[262144]{0}', space=vmem, size = 0x40000, scoped, tag = 'input window, operand 2, single buffered']
    #allocation8 [shape = 'u8[4096]{0}', space=vmem, size = 0x1000, scoped, tag = 'output window, operand 0, single buffered']
    %9 = vsyncpa [#allocation3], 0
    %10 = vsyncpa [#allocation6], 0
    %11 = vsyncpa [#allocation4], 0
    // Predicated region
    $region2: #{tpu_custom_call.1} parent=1 // pred_check
      _
    $region3: #{tpu_custom_call.1} parent=1 // pred_check_branch
      %13 = sbr.rel (0) target = $region5
    $region4: #{tpu_custom_call.1} parent=1 // pred_region
      %s15 = ssub.s32 512, 512
      %16 = vsyncadd [#allocation3], %s15
      %s17 = sshll.u32 [#allocation2], 4
      %s18 = int_to_ptr.vmem [resolvable:$true] %s17
      %23 = dma.hbm_to_vmem [thread:$0]  %s0, 512, %s18, [#allocation3], 256, 256, 16
    $region5: #{tpu_custom_call.1} parent=1 // pred_fallthru
      _
    // Predicated region
    $region6: #{tpu_custom_call.1} parent=1 // pred_check
      _
    $region7: #{tpu_custom_call.1} parent=1 // pred_check_branch
      %25 = sbr.rel (0) target = $region9
    $region8: #{tpu_custom_call.1} parent=1 // pred_region
      %s27 = ssub.s32 4096, 4096
      %28 = vsyncadd [#allocation6], %s27
      %s29 = sshll.u32 [#allocation5], 4
      %s30 = int_to_ptr.vmem [resolvable:$true] %s29
      %35 = dma.hbm_to_vmem [thread:$0]  %s1, 4096, %s30, [#allocation6], 128, 128, 8
    $region9: #{tpu_custom_call.1} parent=1 // pred_fallthru
      _
    // Predicated region
    $region10: #{tpu_custom_call.1} parent=1 // pred_check
      _
    $region11: #{tpu_custom_call.1} parent=1 // pred_check_branch
      %37 = sbr.rel (0) target = $region13
    $region12: #{tpu_custom_call.1} parent=1 // pred_region
      %s39 = ssub.s32 8192, 8192
      %40 = vsyncadd [#allocation6], %s39
      %s41 = sshll.u32 [#allocation7], 4
      %s42 = int_to_ptr.vmem [resolvable:$true] %s41
      %47 = dma.hbm_to_vmem [thread:$0]  %s2, 8192, %s42, [#allocation6], 128, 128, 8
    $region13: #{tpu_custom_call.1} parent=1 // pred_fallthru
      _
    // Predicated region
    $region14: #{tpu_custom_call.1} parent=1 // pred_check
      _
    $region15: #{tpu_custom_call.1} parent=1 // pred_check_branch
      %49 = sbr.rel (0) target = $region17
    $region16: #{tpu_custom_call.1} parent=1 // pred_region
      _
    $region17: #{tpu_custom_call.1} parent=1 // pred_fallthru
      _
    // Predicated region
    $region18: #{tpu_custom_call.1} parent=1 // pred_check
      _
    $region19: #{tpu_custom_call.1} parent=1 // pred_check_branch
      %51 = sbr.rel (0) target = $region21
    $region20: #{tpu_custom_call.1} parent=1 // pred_region
      %52 = dma.done [#allocation3], 512
    $region21: #{tpu_custom_call.1} parent=1 // pred_fallthru
      _
    // Predicated region
    $region22: #{tpu_custom_call.1} parent=1 // pred_check
      _
    $region23: #{tpu_custom_call.1} parent=1 // pred_check_branch
      %54 = sbr.rel (0) target = $region25
    $region24: #{tpu_custom_call.1} parent=1 // pred_region
      %55 = dma.done [#allocation6], 4096
    $region25: #{tpu_custom_call.1} parent=1 // pred_fallthru
      _
    // Predicated region
    $region26: #{tpu_custom_call.1} parent=1 // pred_check
      _
    $region27: #{tpu_custom_call.1} parent=1 // pred_check_branch
      %57 = sbr.rel (0) target = $region29
    $region28: #{tpu_custom_call.1} parent=1 // pred_region
      %58 = dma.done [#allocation6], 8192
    $region29: #{tpu_custom_call.1} parent=1 // pred_fallthru
      _
    %v59 = vld [vmem:[#allocation2] sm:$0xff]
    %v60 = vld [vmem:[#allocation2 + $0x8] sm:$0xff]
    %v61 = vld [vmem:[#allocation2 + $0x10] sm:$0xff]
    %v62 = vld [vmem:[#allocation2 + $0x18] sm:$0xff]
    %v63 = vld [vmem:[#allocation5] sm:$0xff]
    %v64 = vld [vmem:[#allocation5 + $0x8] sm:$0xff]
    %v65 = vld [vmem:[#allocation5 + $0x10] sm:$0xff]
    %v66 = vld [vmem:[#allocation5 + $0x18] sm:$0xff]
    %v67 = vld [vmem:[#allocation5 + $0x20] sm:$0xff]
    %v68 = vld [vmem:[#allocation5 + $0x28] sm:$0xff]
    %v69 = vld [vmem:[#allocation5 + $0x30] sm:$0xff]
    %v70 = vld [vmem:[#allocation5 + $0x38] sm:$0xff]
    %v71 = vld [vmem:[#allocation5 + $0x40] sm:$0xff]
    %v72 = vld [vmem:[#allocation5 + $0x48] sm:$0xff]
    %v73 = vld [vmem:[#allocation5 + $0x50] sm:$0xff]
    %v74 = vld [vmem:[#allocation5 + $0x58] sm:$0xff]
    %v75 = vld [vmem:[#allocation5 + $0x60] sm:$0xff]
    %v76 = vld [vmem:[#allocation5 + $0x68] sm:$0xff]
    %v77 = vld [vmem:[#allocation5 + $0x70] sm:$0xff]
    %v78 = vld [vmem:[#allocation5 + $0x78] sm:$0xff]
    %v79 = vld [vmem:[#allocation5 + $0x80] sm:$0xff]
    %v80 = vld [vmem:[#allocation5 + $0x88] sm:$0xff]
    %v81 = vld [vmem:[#allocation5 + $0x90] sm:$0xff]
    %v82 = vld [vmem:[#allocation5 + $0x98] sm:$0xff]
    %v83 = vld [vmem:[#allocation5 + $0xa0] sm:$0xff]
    %v84 = vld [vmem:[#allocation5 + $0xa8] sm:$0xff]
    %v85 = vld [vmem:[#allocation5 + $0xb0] sm:$0xff]
    %v86 = vld [vmem:[#allocation5 + $0xb8] sm:$0xff]
    %v87 = vld [vmem:[#allocation5 + $0xc0] sm:$0xff]
    %v88 = vld [vmem:[#allocation5 + $0xc8] sm:$0xff]
    %v89 = vld [vmem:[#allocation5 + $0xd0] sm:$0xff]
    %v90 = vld [vmem:[#allocation5 + $0xd8] sm:$0xff]
    %v91 = vld [vmem:[#allocation5 + $0xe0] sm:$0xff]
    %v92 = vld [vmem:[#allocation5 + $0xe8] sm:$0xff]
    %v93 = vld [vmem:[#allocation5 + $0xf0] sm:$0xff]
    %v94 = vld [vmem:[#allocation5 + $0xf8] sm:$0xff]
    %v95 = vld [vmem:[%s3] sm:$0x1]
    %v96 = vlaneseq
    %v97 = vshrl.u32 %v96, 7
    %v98 = vsub.s32 0, %v97
    %v99 = vrot.slane %v95, %v98
    %100 = vmatprep.subr.mxu0 0.0
    %101 = vmatpush1.msra.mxu0 %v63
    %102 = vmatprep.subr.mxu0 0.0
    %103 = vmatpush1.msra.mxu0 %v64
    %104 = vmatprep.subr.mxu0 0.0
    %105 = vmatpush1.msra.mxu0 %v65
    %106 = vmatprep.subr.mxu0 0.0
    %107 = vmatpush1.msra.mxu0 %v66
    %108 = vmatprep.subr.mxu0 0.0
    %109 = vmatpush1.msra.mxu0 %v67
    %110 = vmatprep.subr.mxu0 0.0
    %111 = vmatpush1.msra.mxu0 %v68
    %112 = vmatprep.subr.mxu0 0.0
    %113 = vmatpush1.msra.mxu0 %v69
    %114 = vmatprep.subr.mxu0 0.0
    %115 = vmatpush1.msra.mxu0 %v70
    %116 = vmatprep.subr.mxu0 0.0
    %117 = vmatpush1.msra.mxu0 %v71
    %118 = vmatprep.subr.mxu0 0.0
    %119 = vmatpush1.msra.mxu0 %v72
    %120 = vmatprep.subr.mxu0 0.0
    %121 = vmatpush1.msra.mxu0 %v73
    %122 = vmatprep.subr.mxu0 0.0
    %123 = vmatpush1.msra.mxu0 %v74
    %124 = vmatprep.subr.mxu0 0.0
    %125 = vmatpush1.msra.mxu0 %v75
    %126 = vmatprep.subr.mxu0 0.0
    %127 = vmatpush1.msra.mxu0 %v76
    %128 = vmatprep.subr.mxu0 0.0
    %129 = vmatpush1.msra.mxu0 %v77
    %130 = vmatprep.subr.mxu0 0.0
    %131 = vmatpush1.msra.mxu0 %v78
    %132 = vmatprep.subr.mxu0 0.0
    %133 = vmatpush1.msra.mxu0 %v79
    %134 = vmatprep.subr.mxu0 0.0
    %135 = vmatpush1.msra.mxu0 %v80
    %136 = vmatprep.subr.mxu0 0.0
    %137 = vmatpush1.msra.mxu0 %v81
    %138 = vmatprep.subr.mxu0 0.0
    %139 = vmatpush1.msra.mxu0 %v82
    %140 = vmatprep.subr.mxu0 0.0
    %141 = vmatpush1.msra.mxu0 %v83
    %142 = vmatprep.subr.mxu0 0.0
    %143 = vmatpush1.msra.mxu0 %v84
    %144 = vmatprep.subr.mxu0 0.0
    %145 = vmatpush1.msra.mxu0 %v85
    %146 = vmatprep.subr.mxu0 0.0
    %147 = vmatpush1.msra.mxu0 %v86
    %148 = vmatprep.subr.mxu0 0.0
    %149 = vmatpush1.msra.mxu0 %v87
    %150 = vmatprep.subr.mxu0 0.0
    %151 = vmatpush1.msra.mxu0 %v88
    %152 = vmatprep.subr.mxu0 0.0
    %153 = vmatpush1.msra.mxu0 %v89
    %154 = vmatprep.subr.mxu0 0.0
    %155 = vmatpush1.msra.mxu0 %v90
    %156 = vmatprep.subr.mxu0 0.0
    %157 = vmatpush1.msra.mxu0 %v91
    %158 = vmatprep.subr.mxu0 0.0
    %159 = vmatpush1.msra.mxu0 %v92
    %160 = vmatprep.subr.mxu0 0.0
    %161 = vmatpush1.msra.mxu0 %v93
    %162 = vmatprep.subr.mxu0 0.0
    %163 = vmatpush1.msra.mxu0 %v94
    %164 = vmatprep.mubr.f32.mxu0 %v60
    %165 = vmatmul.mubr.f32.gmra.mrb[0].mxu0 %v59
    %v166 = vpop.f32.mrb[0].mxu0
    %v167 = vadd.f32 %v99, %v166
    %v168 = vpop.f32.mrb[0].mxu0
    %169 = vmatprep.mubr.f32.mxu0 %v62
    %170 = vmatmul.mubr.f32.gmra.mrb[0].mxu0 %v61
    %v171 = vpop.f32.mrb[0].mxu0
    %v172 = vadd.f32 %v99, %v171
    %v173 = vpop.f32.mrb[0].mxu0
    %174 = vdwg.mxu0
    %v175 = vmax.f32 %v167, 0.0
    %v176 = vmax.f32 %v172, 0.0
    %v177 = vld [vmem:[#allocation7] sm:$0xff]
    %v178 = vld [vmem:[#allocation7 + $0x8] sm:$0xff]
    %v179 = vld [vmem:[#allocation7 + $0x10] sm:$0xff]
    %v180 = vld [vmem:[#allocation7 + $0x18] sm:$0xff]
    %v181 = vld [vmem:[#allocation7 + $0x20] sm:$0xff]
    %v182 = vld [vmem:[#allocation7 + $0x28] sm:$0xff]
    %v183 = vld [vmem:[#allocation7 + $0x30] sm:$0xff]
    %v184 = vld [vmem:[#allocation7 + $0x38] sm:$0xff]
    %v185 = vld [vmem:[#allocation7 + $0x40] sm:$0xff]
    %v186 = vld [vmem:[#allocation7 + $0x48] sm:$0xff]
    %v187 = vld [vmem:[#allocation7 + $0x50] sm:$0xff]
    %v188 = vld [vmem:[#allocation7 + $0x58] sm:$0xff]
    %v189 = vld [vmem:[#allocation7 + $0x60] sm:$0xff]
    %v190 = vld [vmem:[#allocation7 + $0x68] sm:$0xff]
    %v191 = vld [vmem:[#allocation7 + $0x70] sm:$0xff]
    %v192 = vld [vmem:[#allocation7 + $0x78] sm:$0xff]
    %v193 = vld [vmem:[%s3 + $0x1] sm:$0x1]
    %v194 = vlaneseq
    %v195 = vshrl.u32 %v194, 7
    %v196 = vsub.s32 0, %v195
    %v197 = vrot.slane %v193, %v196
    %198 = vmatprep.subr.mxu0 0.0
    %199 = vmatpush1.msra.mxu0 %v177
    %200 = vmatprep.subr.mxu0 0.0
    %201 = vmatpush1.msra.mxu0 %v178
    %202 = vmatprep.subr.mxu0 0.0
    %203 = vmatpush1.msra.mxu0 %v179
    %204 = vmatprep.subr.mxu0 0.0
    %205 = vmatpush1.msra.mxu0 %v180
    %206 = vmatprep.subr.mxu0 0.0
    %207 = vmatpush1.msra.mxu0 %v181
    %208 = vmatprep.subr.mxu0 0.0
    %209 = vmatpush1.msra.mxu0 %v182
    %210 = vmatprep.subr.mxu0 0.0
    %211 = vmatpush1.msra.mxu0 %v183
    %212 = vmatprep.subr.mxu0 0.0
    %213 = vmatpush1.msra.mxu0 %v184
    %214 = vmatprep.subr.mxu0 0.0
    %215 = vmatpush1.msra.mxu0 %v185
    %216 = vmatprep.subr.mxu0 0.0
    %217 = vmatpush1.msra.mxu0 %v186
    %218 = vmatprep.subr.mxu0 0.0
    %219 = vmatpush1.msra.mxu0 %v187
    %220 = vmatprep.subr.mxu0 0.0
    %221 = vmatpush1.msra.mxu0 %v188
    %222 = vmatprep.subr.mxu0 0.0
    %223 = vmatpush1.msra.mxu0 %v189
    %224 = vmatprep.subr.mxu0 0.0
    %225 = vmatpush1.msra.mxu0 %v190
    %226 = vmatprep.subr.mxu0 0.0
    %227 = vmatpush1.msra.mxu0 %v191
    %228 = vmatprep.subr.mxu0 0.0
    %229 = vmatpush1.msra.mxu0 %v192
    %230 = vmatprep.subr.mxu0 0.0
    %231 = vmatpush1.msra.mxu0 0.0
    %232 = vmatprep.subr.mxu0 0.0
    %233 = vmatpush1.msra.mxu0 0.0
    %234 = vmatprep.subr.mxu0 0.0
    %235 = vmatpush1.msra.mxu0 0.0
    %236 = vmatprep.subr.mxu0 0.0
    %237 = vmatpush1.msra.mxu0 0.0
    %238 = vmatprep.subr.mxu0 0.0
    %239 = vmatpush1.msra.mxu0 0.0
    %240 = vmatprep.subr.mxu0 0.0
    %241 = vmatpush1.msra.mxu0 0.0
    %242 = vmatprep.subr.mxu0 0.0
    %243 = vmatpush1.msra.mxu0 0.0
    %244 = vmatprep.subr.mxu0 0.0
    %245 = vmatpush1.msra.mxu0 0.0
    %246 = vmatprep.subr.mxu0 0.0
    %247 = vmatpush1.msra.mxu0 0.0
    %248 = vmatprep.subr.mxu0 0.0
    %249 = vmatpush1.msra.mxu0 0.0
    %250 = vmatprep.subr.mxu0 0.0
    %251 = vmatpush1.msra.mxu0 0.0
    %252 = vmatprep.subr.mxu0 0.0
    %253 = vmatpush1.msra.mxu0 0.0
    %254 = vmatprep.subr.mxu0 0.0
    %255 = vmatpush1.msra.mxu0 0.0
    %256 = vmatprep.subr.mxu0 0.0
    %257 = vmatpush1.msra.mxu0 0.0
    %258 = vmatprep.subr.mxu0 0.0
    %259 = vmatpush1.msra.mxu0 0.0
    %260 = vmatprep.subr.mxu0 0.0
    %261 = vmatpush1.msra.mxu0 0.0
    %262 = vmatprep.mubr.f32.mxu0 0.0
    %263 = vmatmul.mubr.f32.gmra.mrb[0].mxu0 %v175
    %v264 = vpop.f32.mrb[0].mxu0
    %v265 = vadd.f32 %v197, %v264
    %v266 = vpop.f32.mrb[0].mxu0
    %267 = vmatprep.mubr.f32.mxu0 0.0
    %268 = vmatmul.mubr.f32.gmra.mrb[0].mxu0 %v176
    %v269 = vpop.f32.mrb[0].mxu0
    %v270 = vadd.f32 %v197, %v269
    %v271 = vpop.f32.mrb[0].mxu0
    %272 = vdwg.mxu0
    %s273 = scalar_lea.vmem [#allocation7], 128
    %v274 = vld [vmem:[%s273] sm:$0xff]
    %v275 = vld [vmem:[%s273 + $0x8] sm:$0xff]
    %v276 = vld [vmem:[%s273 + $0x10] sm:$0xff]
    %v277 = vld [vmem:[%s273 + $0x18] sm:$0xff]
    %v278 = vld [vmem:[%s273 + $0x20] sm:$0xff]
    %v279 = vld [vmem:[%s273 + $0x28] sm:$0xff]
    %v280 = vld [vmem:[%s273 + $0x30] sm:$0xff]
    %v281 = vld [vmem:[%s273 + $0x38] sm:$0xff]
    %v282 = vld [vmem:[%s273 + $0x40] sm:$0xff]
    %v283 = vld [vmem:[%s273 + $0x48] sm:$0xff]
    %v284 = vld [vmem:[%s273 + $0x50] sm:$0xff]
    %v285 = vld [vmem:[%s273 + $0x58] sm:$0xff]
    %v286 = vld [vmem:[%s273 + $0x60] sm:$0xff]
    %v287 = vld [vmem:[%s273 + $0x68] sm:$0xff]
    %v288 = vld [vmem:[%s273 + $0x70] sm:$0xff]
    %v289 = vld [vmem:[%s273 + $0x78] sm:$0xff]
    %s290 = scalar_lea.vmem [#allocation7], 256
    %v291 = vld [vmem:[%s290] sm:$0xff]
    %v292 = vld [vmem:[%s290 + $0x8] sm:$0xff]
    %v293 = vld [vmem:[%s290 + $0x10] sm:$0xff]
    %v294 = vld [vmem:[%s290 + $0x18] sm:$0xff]
    %v295 = vld [vmem:[%s290 + $0x20] sm:$0xff]
    %v296 = vld [vmem:[%s290 + $0x28] sm:$0xff]
    %v297 = vld [vmem:[%s290 + $0x30] sm:$0xff]
    %v298 = vld [vmem:[%s290 + $0x38] sm:$0xff]
    %v299 = vld [vmem:[%s290 + $0x40] sm:$0xff]
    %v300 = vld [vmem:[%s290 + $0x48] sm:$0xff]
    %v301 = vld [vmem:[%s290 + $0x50] sm:$0xff]
    %v302 = vld [vmem:[%s290 + $0x58] sm:$0xff]
    %v303 = vld [vmem:[%s290 + $0x60] sm:$0xff]
    %v304 = vld [vmem:[%s290 + $0x68] sm:$0xff]
    %v305 = vld [vmem:[%s290 + $0x70] sm:$0xff]
    %v306 = vld [vmem:[%s290 + $0x78] sm:$0xff]
    %307 = vmatprep.subr.mxu0 0.0
    %308 = vmatpush1.msra.mxu0 %v291
    %309 = vmatprep.subr.mxu0 0.0
    %310 = vmatpush1.msra.mxu0 %v292
    %311 = vmatprep.subr.mxu0 0.0
    %312 = vmatpush1.msra.mxu0 %v293
    %313 = vmatprep.subr.mxu0 0.0
    %314 = vmatpush1.msra.mxu0 %v294
    %315 = vmatprep.subr.mxu0 0.0
    %316 = vmatpush1.msra.mxu0 %v295
    %317 = vmatprep.subr.mxu0 0.0
    %318 = vmatpush1.msra.mxu0 %v296
    %319 = vmatprep.subr.mxu0 0.0
    %320 = vmatpush1.msra.mxu0 %v297
    %321 = vmatprep.subr.mxu0 0.0
    %322 = vmatpush1.msra.mxu0 %v298
    %323 = vmatprep.subr.mxu0 0.0
    %324 = vmatpush1.msra.mxu0 %v299
    %325 = vmatprep.subr.mxu0 0.0
    %326 = vmatpush1.msra.mxu0 %v300
    %327 = vmatprep.subr.mxu0 0.0
    %328 = vmatpush1.msra.mxu0 %v301
    %329 = vmatprep.subr.mxu0 0.0
    %330 = vmatpush1.msra.mxu0 %v302
    %331 = vmatprep.subr.mxu0 0.0
    %332 = vmatpush1.msra.mxu0 %v303
    %333 = vmatprep.subr.mxu0 0.0
    %334 = vmatpush1.msra.mxu0 %v304
    %335 = vmatprep.subr.mxu0 0.0
    %336 = vmatpush1.msra.mxu0 %v305
    %337 = vmatprep.subr.mxu0 0.0
    %338 = vmatpush1.msra.mxu0 %v306
    %339 = vmatprep.subr.mxu0 0.0
    %340 = vmatpush1.msra.mxu0 0.0
    %341 = vmatprep.subr.mxu0 0.0
    %342 = vmatpush1.msra.mxu0 0.0
    %343 = vmatprep.subr.mxu0 0.0
    %344 = vmatpush1.msra.mxu0 0.0
    %345 = vmatprep.subr.mxu0 0.0
    %346 = vmatpush1.msra.mxu0 0.0
    %347 = vmatprep.subr.mxu0 0.0
    %348 = vmatpush1.msra.mxu0 0.0
    %349 = vmatprep.subr.mxu0 0.0
    %350 = vmatpush1.msra.mxu0 0.0
    %351 = vmatprep.subr.mxu0 0.0
    %352 = vmatpush1.msra.mxu0 0.0
    %353 = vmatprep.subr.mxu0 0.0
    %354 = vmatpush1.msra.mxu0 0.0
    %355 = vmatprep.subr.mxu0 0.0
    %356 = vmatpush1.msra.mxu0 0.0
    %357 = vmatprep.subr.mxu0 0.0
    %358 = vmatpush1.msra.mxu0 0.0
    %359 = vmatprep.subr.mxu0 0.0
    %360 = vmatpush1.msra.mxu0 0.0
    %361 = vmatprep.subr.mxu0 0.0
    %362 = vmatpush1.msra.mxu0 0.0
    %363 = vmatprep.subr.mxu0 0.0
    %364 = vmatpush1.msra.mxu0 0.0
    %365 = vmatprep.subr.mxu0 0.0
    %366 = vmatpush1.msra.mxu0 0.0
    %367 = vmatprep.subr.mxu0 0.0
    %368 = vmatpush1.msra.mxu0 0.0
    %369 = vmatprep.subr.mxu0 0.0
    %370 = vmatpush1.msra.mxu0 0.0
    %371 = vmatprep.mubr.f32.mxu0 0.0
    %372 = vmatmul.mubr.f32.gmra.mrb[0].mxu0 %v270
    %v373 = vpop.f32.mrb[0].mxu0
    %v374 = vadd.f32 0.0, %v373
    %v375 = vpop.f32.mrb[0].mxu0
    %376 = vdwg.mxu0
    %377 = vmatprep.subr.mxu0 0.0
    %378 = vmatpush1.msra.mxu0 %v274
    %379 = vmatprep.subr.mxu0 0.0
    %380 = vmatpush1.msra.mxu0 %v275
    %381 = vmatprep.subr.mxu0 0.0
    %382 = vmatpush1.msra.mxu0 %v276
    %383 = vmatprep.subr.mxu0 0.0
    %384 = vmatpush1.msra.mxu0 %v277
    %385 = vmatprep.subr.mxu0 0.0
    %386 = vmatpush1.msra.mxu0 %v278
    %387 = vmatprep.subr.mxu0 0.0
    %388 = vmatpush1.msra.mxu0 %v279
    %389 = vmatprep.subr.mxu0 0.0
    %390 = vmatpush1.msra.mxu0 %v280
    %391 = vmatprep.subr.mxu0 0.0
    %392 = vmatpush1.msra.mxu0 %v281
    %393 = vmatprep.subr.mxu0 0.0
    %394 = vmatpush1.msra.mxu0 %v282
    %395 = vmatprep.subr.mxu0 0.0
    %396 = vmatpush1.msra.mxu0 %v283
    %397 = vmatprep.subr.mxu0 0.0
    %398 = vmatpush1.msra.mxu0 %v284
    %399 = vmatprep.subr.mxu0 0.0
    %400 = vmatpush1.msra.mxu0 %v285
    %401 = vmatprep.subr.mxu0 0.0
    %402 = vmatpush1.msra.mxu0 %v286
    %403 = vmatprep.subr.mxu0 0.0
    %404 = vmatpush1.msra.mxu0 %v287
    %405 = vmatprep.subr.mxu0 0.0
    %406 = vmatpush1.msra.mxu0 %v288
    %407 = vmatprep.subr.mxu0 0.0
    %408 = vmatpush1.msra.mxu0 %v289
    %409 = vmatprep.subr.mxu0 0.0
    %410 = vmatpush1.msra.mxu0 0.0
    %411 = vmatprep.subr.mxu0 0.0
    %412 = vmatpush1.msra.mxu0 0.0
    %413 = vmatprep.subr.mxu0 0.0
    %414 = vmatpush1.msra.mxu0 0.0
    %415 = vmatprep.subr.mxu0 0.0
    %416 = vmatpush1.msra.mxu0 0.0
    %417 = vmatprep.subr.mxu0 0.0
    %418 = vmatpush1.msra.mxu0 0.0
    %419 = vmatprep.subr.mxu0 0.0
    %420 = vmatpush1.msra.mxu0 0.0
    %421 = vmatprep.subr.mxu0 0.0
    %422 = vmatpush1.msra.mxu0 0.0
    %423 = vmatprep.subr.mxu0 0.0
    %424 = vmatpush1.msra.mxu0 0.0
    %425 = vmatprep.subr.mxu0 0.0
    %426 = vmatpush1.msra.mxu0 0.0
    %427 = vmatprep.subr.mxu0 0.0
    %428 = vmatpush1.msra.mxu0 0.0
    %429 = vmatprep.subr.mxu0 0.0
    %430 = vmatpush1.msra.mxu0 0.0
    %431 = vmatprep.subr.mxu0 0.0
    %432 = vmatpush1.msra.mxu0 0.0
    %433 = vmatprep.subr.mxu0 0.0
    %434 = vmatpush1.msra.mxu0 0.0
    %435 = vmatprep.subr.mxu0 0.0
    %436 = vmatpush1.msra.mxu0 0.0
    %437 = vmatprep.subr.mxu0 0.0
    %438 = vmatpush1.msra.mxu0 0.0
    %439 = vmatprep.subr.mxu0 0.0
    %440 = vmatpush1.msra.mxu0 0.0
    %441 = vmatprep.mubr.f32.mxu0 0.0
    %442 = vmatmul.mubr.f32.gmra.mrb[0].mxu0 %v265
    %v443 = vpop.f32.mrb[0].mxu0
    %v444 = vadd.f32 %v374, %v443
    %v445 = vpop.f32.mrb[0].mxu0
    %446 = vdwg.mxu0
    %v447 = vld [vmem:[%s3 + $0x2] sm:$0x1]
    %v448 = vlaneseq
    %v449 = vshrl.u32 %v448, 7
    %v450 = vsub.s32 0, %v449
    %v451 = vrot.slane %v447, %v450
    %v452 = vadd.f32 %v444, %v451
    %v453 = vmax.f32 %v452, 0.0
    %s454 = scalar_lea.vmem [#allocation7], 384
    %v455 = vld [vmem:[%s454] sm:$0xff]
    %v456 = vld [vmem:[%s454 + $0x8] sm:$0xff]
    %v457 = vld [vmem:[%s454 + $0x10] sm:$0xff]
    %v458 = vld [vmem:[%s454 + $0x18] sm:$0xff]
    %v459 = vld [vmem:[%s454 + $0x20] sm:$0xff]
    %v460 = vld [vmem:[%s454 + $0x28] sm:$0xff]
    %v461 = vld [vmem:[%s454 + $0x30] sm:$0xff]
    %v462 = vld [vmem:[%s454 + $0x38] sm:$0xff]
    %v463 = vld [vmem:[%s454 + $0x40] sm:$0xff]
    %v464 = vld [vmem:[%s454 + $0x48] sm:$0xff]
    %v465 = vld [vmem:[%s454 + $0x50] sm:$0xff]
    %v466 = vld [vmem:[%s454 + $0x58] sm:$0xff]
    %v467 = vld [vmem:[%s454 + $0x60] sm:$0xff]
    %v468 = vld [vmem:[%s454 + $0x68] sm:$0xff]
    %v469 = vld [vmem:[%s454 + $0x70] sm:$0xff]
    %v470 = vld [vmem:[%s454 + $0x78] sm:$0xff]
    %v471 = vld [vmem:[%s3 + $0x3] sm:$0x1]
    %v472 = vlaneseq
    %v473 = vshrl.u32 %v472, 7
    %v474 = vsub.s32 0, %v473
    %v475 = vrot.slane %v471, %v474
    %476 = vmatprep.subr.mxu0 0.0
    %477 = vmatpush1.msra.mxu0 %v455
    %478 = vmatprep.subr.mxu0 0.0
    %479 = vmatpush1.msra.mxu0 %v456
    %480 = vmatprep.subr.mxu0 0.0
    %481 = vmatpush1.msra.mxu0 %v457
    %482 = vmatprep.subr.mxu0 0.0
    %483 = vmatpush1.msra.mxu0 %v458
    %484 = vmatprep.subr.mxu0 0.0
    %485 = vmatpush1.msra.mxu0 %v459
    %486 = vmatprep.subr.mxu0 0.0
    %487 = vmatpush1.msra.mxu0 %v460
    %488 = vmatprep.subr.mxu0 0.0
    %489 = vmatpush1.msra.mxu0 %v461
    %490 = vmatprep.subr.mxu0 0.0
    %491 = vmatpush1.msra.mxu0 %v462
    %492 = vmatprep.subr.mxu0 0.0
    %493 = vmatpush1.msra.mxu0 %v463
    %494 = vmatprep.subr.mxu0 0.0
    %495 = vmatpush1.msra.mxu0 %v464
    %496 = vmatprep.subr.mxu0 0.0
    %497 = vmatpush1.msra.mxu0 %v465
    %498 = vmatprep.subr.mxu0 0.0
    %499 = vmatpush1.msra.mxu0 %v466
    %500 = vmatprep.subr.mxu0 0.0
    %501 = vmatpush1.msra.mxu0 %v467
    %502 = vmatprep.subr.mxu0 0.0
    %503 = vmatpush1.msra.mxu0 %v468
    %504 = vmatprep.subr.mxu0 0.0
    %505 = vmatpush1.msra.mxu0 %v469
    %506 = vmatprep.subr.mxu0 0.0
    %507 = vmatpush1.msra.mxu0 %v470
    %508 = vmatprep.subr.mxu0 0.0
    %509 = vmatpush1.msra.mxu0 0.0
    %510 = vmatprep.subr.mxu0 0.0
    %511 = vmatpush1.msra.mxu0 0.0
    %512 = vmatprep.subr.mxu0 0.0
    %513 = vmatpush1.msra.mxu0 0.0
    %514 = vmatprep.subr.mxu0 0.0
    %515 = vmatpush1.msra.mxu0 0.0
    %516 = vmatprep.subr.mxu0 0.0
    %517 = vmatpush1.msra.mxu0 0.0
    %518 = vmatprep.subr.mxu0 0.0
    %519 = vmatpush1.msra.mxu0 0.0
    %520 = vmatprep.subr.mxu0 0.0
    %521 = vmatpush1.msra.mxu0 0.0
    %522 = vmatprep.subr.mxu0 0.0
    %523 = vmatpush1.msra.mxu0 0.0
    %524 = vmatprep.subr.mxu0 0.0
    %525 = vmatpush1.msra.mxu0 0.0
    %526 = vmatprep.subr.mxu0 0.0
    %527 = vmatpush1.msra.mxu0 0.0
    %528 = vmatprep.subr.mxu0 0.0
    %529 = vmatpush1.msra.mxu0 0.0
    %530 = vmatprep.subr.mxu0 0.0
    %531 = vmatpush1.msra.mxu0 0.0
    %532 = vmatprep.subr.mxu0 0.0
    %533 = vmatpush1.msra.mxu0 0.0
    %534 = vmatprep.subr.mxu0 0.0
    %535 = vmatpush1.msra.mxu0 0.0
    %536 = vmatprep.subr.mxu0 0.0
    %537 = vmatpush1.msra.mxu0 0.0
    %538 = vmatprep.subr.mxu0 0.0
    %539 = vmatpush1.msra.mxu0 0.0
    %540 = vmatprep.mubr.f32.mxu0 0.0
    %541 = vmatmul.mubr.f32.gmra.mrb[0].mxu0 %v453
    %v542 = vpop.f32.mrb[0].mxu0
    %v543 = vadd.f32 %v475, %v542
    %v544 = vpop.f32.mrb[0].mxu0
    %545 = vdwg.mxu0
    %546 = vmax.xlane.f32.xlu0 %v543
    %v547 = vpop.xlane.xlu0 %546
    %v548 = vsub.f32 %v543, %v547
    %v549 = vmul.f32 %v548, 1.442695
    %v550 = vpow.pop %v549
    %551 = vadd.xlane.f32.xlu0 %v550
    %v552 = vpop.xlane.xlu0 %551
    %v553 = vlog2.pop %v552
    %v554 = vmul.f32 %v553, 0.6931472
    %v555 = vadd.f32 %v547, %v554
    %v556 = vsub.f32 %v543, %v555
    %v557 = vlaneseq
    %v558 = vand.u32 %v557, 127
    %vm559 = vcmp.lt.s32.totalorder %v558, 2
    %v560 = vsel %vm559, %v556, 0.0
    %561 = vrot.lane.b32.xlu0 %v270, 10
    %v562 = vpop.permute.xlu0 %561
    %v563 = vadd.f32 %v265, %v562
    %564 = vrot.lane.b32.xlu0 %v560, 20
    %v565 = vpop.permute.xlu0 %564
    %v566 = vadd.f32 %v563, %v565
    %567 = vst [vmem:[#allocation8] sm:$0xff] %v566
    // Predicated region
    $region30: #{tpu_custom_call.1} parent=1 // pred_check
      _
    $region31: #{tpu_custom_call.1} parent=1 // pred_check_branch
      %569 = sbr.rel (0) target = $region33
    $region32: #{tpu_custom_call.1} parent=1 // pred_region
      %s571 = ssub.s32 128, 128
      %572 = vsyncadd [#allocation4], %s571
      %s574 = sshll.u32 [#allocation8], 4
      %s575 = int_to_ptr.vmem [resolvable:$true] %s574
      %577 = dma.vmem_to_hbm [thread:$0]  %s575, 128, %s4, [#allocation4]
    $region33: #{tpu_custom_call.1} parent=1 // pred_fallthru
      _
    // Predicated region
    $region34: #{tpu_custom_call.1} parent=1 // pred_check
      _
    $region35: #{tpu_custom_call.1} parent=1 // pred_check_branch
      %579 = sbr.rel (0) target = $region37
    $region36: #{tpu_custom_call.1} parent=1 // pred_region
      %580 = dma.done [#allocation4], 128
    $region37: #{tpu_custom_call.1} parent=1 // pred_fallthru
      _
    %581 = vsyncpa [#allocation3], 1
    %582 = vsyncpa [#allocation6], 1
    %583 = vsyncpa [#allocation4], 1

</llo_original>
